<compile_context>
chip_gen: v6e
topology: v6e:2x2x1
jax: 0.10.0
libtpu: 0.0.40
codegen_flags: <defaults>
</compile_context>

<pallas_src>
import jax
import jax.numpy as jnp
from jax.experimental import pallas as pl
from jax.experimental.pallas import tpu as pltpu

_SELU_ALPHA = 1.6732632423543772
_SELU_SCALE = 1.0507009873554805

_LANE = 128
_DEFAULT_TILE_LANES = 4096           # 2k-8k lane tile: good DMA/compute overlap
_VMEM_LIMIT = 32 * 1024 * 1024       # explicit budget; fits v7x (64 MiB physical),
                                     # raises v5e's 16 MiB scoped default


def _round_up(x, m):
    return (x + m - 1) // m * m


# --------------- phase A: conv (+ pool concat) + partial BN stats --------------
def _make_stats_kernel(*, cin, n_valid, tile_p, has_pool):
    def kernel(*refs):
        if has_pool:
            patch_ref, w_ref, sel_ref, z_ref, psum_ref, psq_ref = refs
        else:
            patch_ref, w_ref, z_ref, psum_ref, psq_ref = refs

        # 3x3 stride-2 conv as one MXU matmul: (nOut, 9*Cin) @ (9*Cin, tile_p).
        # When nIn < nOut the rows [nConv:nOut) of w_ref are zero; the pool
        # branch is added into those rows below, so torch.cat == add.
        z = jnp.dot(w_ref[...], patch_ref[...], preferred_element_type=jnp.float32)

        if has_pool:
            # The 2x2/s2 max-pool window is exactly the bottom-right 2x2 of the
            # 3x3/s2/pad-1 conv window, so its 4 taps already live in the im2col
            # block (row order (kh, kw, c)) -> no extra HBM traffic for pooling.
            p11 = patch_ref[pl.ds(4 * cin, cin), :]
            p12 = patch_ref[pl.ds(5 * cin, cin), :]
            p21 = patch_ref[pl.ds(7 * cin, cin), :]
            p22 = patch_ref[pl.ds(8 * cin, cin), :]
            pooled = jnp.maximum(jnp.maximum(p11, p12), jnp.maximum(p21, p22))
            # (nOut, nIn) 0/1 selector places pooled channels at rows [nConv:nOut)
            z = z + jnp.dot(sel_ref[...], pooled, preferred_element_type=jnp.float32)

        z_ref[...] = z.astype(z_ref.dtype)

        # per-tile partial sums for training-mode BatchNorm stats (padded lanes
        # masked out; divisor applied with the true count in the wrapper).
        t = pl.program_id(0)
        col = jax.lax.broadcasted_iota(jnp.int32, z.shape, 1) + t * tile_p
        zm = jnp.where(col < n_valid, z, 0.0)
        psum_ref[0] = jnp.sum(zm, axis=1, keepdims=True)
        psq_ref[0] = jnp.sum(zm * zm, axis=1, keepdims=True)

    return kernel


# --------------- phase B: y = SELU(z * scale + shift) --------------------------
def _norm_act_kernel(z_ref, scale_ref, shift_ref, o_ref):
    zn = z_ref[...].astype(jnp.float32) * scale_ref[...] + shift_ref[...]
    o_ref[...] = (_SELU_SCALE *
                  jnp.where(zn > 0, zn, _SELU_ALPHA * (jnp.exp(zn) - 1.0))
                  ).astype(o_ref.dtype)


def downsampling_block_forward(x_nchw, w_conv, gamma, beta, *, eps=1e-3,
                               storage_dtype=jnp.float32,
                               tile_lanes=_DEFAULT_TILE_LANES):
    """Forward pass matching DownSamplingBlock.forward (module in default
    training mode: BatchNorm normalizes with biased batch stats over (N,H,W))."""
    N, nIn, H, W = x_nchw.shape
    nConv = w_conv.shape[0]
    nOut = gamma.shape[0]
    has_pool = nIn < nOut
    if has_pool and (H % 2 or W % 2):
        raise ValueError("nIn < nOut requires even H, W (same constraint as the "
                         "PyTorch channel concat of conv and pool outputs).")
    K = 3
    Ho = (H + 2 - K) // 2 + 1
    Wo = (W + 2 - K) // 2 + 1
    P = N * Ho * Wo

    tile_p = min(_round_up(tile_lanes, _LANE), _round_up(P, _LANE))
    P_pad = _round_up(P, tile_p)
    num_tiles = P_pad // tile_p

    x = x_nchw.astype(jnp.float32)

    # ---- wrapper glue: im2col (9*Cin, P_pad), row order (kh, kw, c) ------------
    # TODO(synk): tap extraction still round-trips a 9x copy of x through HBM via
    # XLA; moving it in-kernel (phase-image / halo DMA) would cut input traffic further.
    xp = jnp.pad(x, ((0, 0), (0, 0), (1, 1), (1, 1)))
    taps = []
    for kh in range(K):
        for kw in range(K):
            win = xp[:, :, kh::2, kw::2][:, :, :Ho, :Wo]            # (N, Cin, Ho, Wo)
            taps.append(jnp.transpose(win, (1, 0, 2, 3)).reshape(nIn, P))
    patches = jnp.concatenate(taps, axis=0)                          # (9*Cin, P)
    patches = jnp.pad(patches, ((0, 0), (0, P_pad - P))).astype(storage_dtype)

    # conv weight -> (nOut, 9*Cin) in matching (kh, kw, c) column order; zero rows
    # for the channels owned by the pool branch.
    w2 = jnp.transpose(w_conv, (0, 2, 3, 1)).reshape(nConv, nIn * K * K)
    if has_pool:
        w2 = jnp.pad(w2, ((0, nOut - nConv), (0, 0)))
    w2 = w2.astype(storage_dtype)

    in_specs = [
        pl.BlockSpec((nIn * K * K, tile_p), lambda t: (0, t)),
        pl.BlockSpec((nOut, nIn * K * K), lambda t: (0, 0)),
    ]
    operands = [patches, w2]
    if has_pool:
        sel = jnp.zeros((nOut, nIn), jnp.float32)
        sel = sel.at[jnp.arange(nIn) + nConv, jnp.arange(nIn)].set(1.0)
        in_specs.append(pl.BlockSpec((nOut, nIn), lambda t: (0, 0)))
        operands.append(sel.astype(storage_dtype))

    cp = pltpu.CompilerParams(dimension_semantics=("parallel",),
                              vmem_limit_bytes=_VMEM_LIMIT)

    stats_kernel = _make_stats_kernel(cin=nIn, n_valid=P, tile_p=tile_p,
                                      has_pool=has_pool)

    z, psum, psq = pl.pallas_call(
        stats_kernel,
        out_shape=(jax.ShapeDtypeStruct((nOut, P_pad), storage_dtype),
                   jax.ShapeDtypeStruct((num_tiles, nOut, 1), jnp.float32),
                   jax.ShapeDtypeStruct((num_tiles, nOut, 1), jnp.float32)),
        grid=(num_tiles,),
        in_specs=in_specs,
        out_specs=(pl.BlockSpec((nOut, tile_p), lambda t: (0, t)),
                   pl.BlockSpec((1, nOut, 1), lambda t: (t, 0, 0)),
                   pl.BlockSpec((1, nOut, 1), lambda t: (t, 0, 0))),
        compiler_params=cp,
    )(*operands)

    # ---- tiny cross-tile reduction; fold gamma/beta into (scale, shift) -------
    count = float(P)
    mean = jnp.sum(psum[:, :, 0], axis=0) / count                    # (nOut,)
    # NOTE: E[z^2]-E[z]^2 can cancel if |mean| >> std; acceptable at eps=1e-3.
    var = jnp.sum(psq[:, :, 0], axis=0) / count - mean * mean        # biased (training)
    scale = gamma.astype(jnp.float32) * jax.lax.rsqrt(var + eps)
    shift = beta.astype(jnp.float32) - mean * scale

    out_flat = pl.pallas_call(
        _norm_act_kernel,
        out_shape=jax.ShapeDtypeStruct((nOut, P_pad), jnp.float32),
        grid=(num_tiles,),
        in_specs=[pl.BlockSpec((nOut, tile_p), lambda t: (0, t)),
                  pl.BlockSpec((nOut, 1), lambda t: (0, 0)),
                  pl.BlockSpec((nOut, 1), lambda t: (0, 0))],
        out_specs=pl.BlockSpec((nOut, tile_p), lambda t: (0, t)),
        compiler_params=cp,
    )(z, scale.reshape(nOut, 1), shift.reshape(nOut, 1))

    # tiny slice/reshape/transpose back to PyTorch NCHW convention
    out = out_flat[:, :P].reshape(nOut, N, Ho, Wo)
    return jnp.transpose(out, (1, 0, 2, 3))


def _reference_forward(x, w_conv, gamma, beta, nIn, nOut, eps=1e-3):
    """Pure-JAX reference (same math, no Pallas) for a sanity check."""
    x = x.astype(jnp.float32)
    conv = jax.lax.conv_general_dilated(
        x, w_conv.astype(jnp.float32), window_strides=(2, 2),
        padding=((1, 1), (1, 1)),
        dimension_numbers=("NCHW", "OIHW", "NCHW"))
    if nIn < nOut:
        pooled = jax.lax.reduce_window(
            x, -jnp.inf, jax.lax.max, (1, 1, 2, 2), (1, 1, 2, 2), "VALID")
        out = jnp.concatenate([conv, pooled], axis=1)
    else:
        out = conv
    mean = jnp.mean(out, axis=(0, 2, 3), keepdims=True)
    var = jnp.mean((out - mean) ** 2, axis=(0, 2, 3), keepdims=True)
    zn = (out - mean) * jax.lax.rsqrt(var + eps)
    zn = zn * gamma.reshape(1, -1, 1, 1) + beta.reshape(1, -1, 1, 1)
    return jax.nn.selu(zn)


if __name__ == "__main__":
    # shapes consistent with the module: batch=2, nIn=4, nOut=8, spatial=16
    N, nIn, nOut, H, W = 2, 4, 8, 16, 16
    nConv = nOut - nIn if nIn < nOut else nOut

    key = jax.random.PRNGKey(0)
    k_x, k_w, k_g, k_b = jax.random.split(key, 4)
    x = jax.random.normal(k_x, (N, nIn, H, W), dtype=jnp.float32)
    w_conv = 0.1 * jax.random.normal(k_w, (nConv, nIn, 3, 3), dtype=jnp.float32)  # Conv2d weight (no bias)
    gamma = 1.0 + 0.05 * jax.random.normal(k_g, (nOut,), dtype=jnp.float32)       # BN weight
    beta = 0.05 * jax.random.normal(k_b, (nOut,), dtype=jnp.float32)              # BN bias

    ref = jax.block_until_ready(_reference_forward(x, w_conv, gamma, beta, nIn, nOut))

    # f32 HBM storage (faithful to the PyTorch module)
    out = jax.block_until_ready(downsampling_block_forward(x, w_conv, gamma, beta))
    assert out.shape == (N, nOut, H // 2, W // 2)
    assert jnp.allclose(out, ref, atol=1e-4, rtol=1e-4), float(jnp.max(jnp.abs(out - ref)))

    # bf16 HBM storage (halved DMA traffic; f32 MXU accumulation + f32 BN math)
    out_bf16 = jax.block_until_ready(
        downsampling_block_forward(x, w_conv, gamma, beta, storage_dtype=jnp.bfloat16))
    assert jnp.allclose(out_bf16, ref, atol=5e-2, rtol=5e-2), \
        float(jnp.max(jnp.abs(out_bf16 - ref)))

    # nIn >= nOut path (no pool branch / no concat): specialized kernel variant
    nIn2 = nOut2 = 8
    k_x2, k_w2 = jax.random.split(k_x)
    x2 = jax.random.normal(k_x2, (N, nIn2, H, W), dtype=jnp.float32)
    w_conv2 = 0.1 * jax.random.normal(k_w2, (nOut2, nIn2, 3, 3), dtype=jnp.float32)
    out2 = jax.block_until_ready(downsampling_block_forward(x2, w_conv2, gamma, beta))
    ref2 = jax.block_until_ready(_reference_forward(x2, w_conv2, gamma, beta, nIn2, nOut2))
    assert jnp.allclose(out2, ref2, atol=1e-4, rtol=1e-4), \
        float(jnp.max(jnp.abs(out2 - ref2)))

    print("KERNEL_OK")
</pallas_src>

<mosaic_0001>
module attributes {stable_mosaic.version = 11 : i64} {
  func.func @kernel(%arg0: i32, %arg1: memref<36x128xf32, #tpu.memory_space<vmem>>, %arg2: memref<8x36xf32, #tpu.memory_space<vmem>>, %arg3: memref<8x4xf32, #tpu.memory_space<vmem>>, %arg4: memref<8x128xf32, #tpu.memory_space<vmem>>, %arg5: memref<1x8x1xf32, #tpu.memory_space<vmem>>, %arg6: memref<1x8x1xf32, #tpu.memory_space<vmem>>) attributes {dimension_semantics = [#tpu.dimension_semantics<parallel>], iteration_bounds = array<i64: 1>, scalar_prefetch = 0 : i64, scratch_operands = 0 : i64, tpu.core_type = #tpu.core_type<tc>, window_params = [{transform_indices = @transform_0, window_bounds = array<i64: 36, 128>}, {pipeline_mode = #tpu.pipeline_mode<synchronous>, transform_indices = @transform_1, window_bounds = array<i64: 8, 36>}, {pipeline_mode = #tpu.pipeline_mode<synchronous>, transform_indices = @transform_2, window_bounds = array<i64: 8, 4>}, {transform_indices = @transform_3, window_bounds = array<i64: 8, 128>}, {transform_indices = @transform_4, window_bounds = array<i64: 1, 8, 1>}, {transform_indices = @transform_5, window_bounds = array<i64: 1, 8, 1>}]} {
    %c0 = arith.constant 0 : index
    %c0_0 = arith.constant 0 : index
    %0 = vector.load %arg2[%c0, %c0_0] : memref<8x36xf32, #tpu.memory_space<vmem>>, vector<8x36xf32>
    %c0_1 = arith.constant 0 : index
    %c0_2 = arith.constant 0 : index
    %1 = vector.load %arg1[%c0_1, %c0_2] : memref<36x128xf32, #tpu.memory_space<vmem>>, vector<36x128xf32>
    %cst = arith.constant dense<0.000000e+00> : vector<8x128xf32>
    %2 = tpu.matmul %0, %1, %cst {dimension_numbers = #tpu.dot_dimension_numbers<[1], [0], [0], [1], [0, 0, 1, 1], [], []>} : vector<8x36xf32>, vector<36x128xf32>, vector<8x128xf32> -> vector<8x128xf32>
    %c16 = arith.constant 16 : index
    %c0_3 = arith.constant 0 : index
    %3 = vector.load %arg1[%c16, %c0_3] : memref<36x128xf32, #tpu.memory_space<vmem>>, vector<4x128xf32>
    %c20 = arith.constant 20 : index
    %c0_4 = arith.constant 0 : index
    %4 = vector.load %arg1[%c20, %c0_4] : memref<36x128xf32, #tpu.memory_space<vmem>>, vector<4x128xf32>
    %c28 = arith.constant 28 : index
    %c0_5 = arith.constant 0 : index
    %5 = vector.load %arg1[%c28, %c0_5] : memref<36x128xf32, #tpu.memory_space<vmem>>, vector<4x128xf32>
    %c32 = arith.constant 32 : index
    %c0_6 = arith.constant 0 : index
    %6 = vector.load %arg1[%c32, %c0_6] : memref<36x128xf32, #tpu.memory_space<vmem>>, vector<4x128xf32>
    %7 = arith.maximumf %3, %4 : vector<4x128xf32>
    %8 = arith.maximumf %5, %6 : vector<4x128xf32>
    %9 = arith.maximumf %7, %8 : vector<4x128xf32>
    %c0_7 = arith.constant 0 : index
    %c0_8 = arith.constant 0 : index
    %10 = vector.load %arg3[%c0_7, %c0_8] : memref<8x4xf32, #tpu.memory_space<vmem>>, vector<8x4xf32>
    %cst_9 = arith.constant dense<0.000000e+00> : vector<8x128xf32>
    %11 = tpu.matmul %10, %9, %cst_9 {dimension_numbers = #tpu.dot_dimension_numbers<[1], [0], [0], [1], [0, 0, 1, 1], [], []>} : vector<8x4xf32>, vector<4x128xf32>, vector<8x128xf32> -> vector<8x128xf32>
    %12 = arith.addf %2, %11 : vector<8x128xf32>
    %c0_10 = arith.constant 0 : index
    %c0_11 = arith.constant 0 : index
    %13 = vector.load %arg4[%c0_10, %c0_11] : memref<8x128xf32, #tpu.memory_space<vmem>>, vector<8x128xf32>
    tpu.vector_store %arg4[%c0_10, %c0_11], %12 {strides = array<i32>} : memref<8x128xf32, #tpu.memory_space<vmem>>, vector<8x128xf32>,
    %14 = tpu.iota {dimensions = array<i32: 1>} : vector<8x128xi32>
    %c128_i32 = arith.constant 128 : i32
    %15 = arith.muli %arg0, %c128_i32 : i32
    %16 = vector.broadcast %15 : i32 to vector<8x128xi32>
    %17 = arith.addi %14, %16 : vector<8x128xi32>
    %c128_i32_12 = arith.constant 128 : i32
    %18 = vector.broadcast %c128_i32_12 : i32 to vector<8x128xi32>
    %19 = arith.cmpi slt, %17, %18 : vector<8x128xi32>
    %cst_13 = arith.constant 0.000000e+00 : f32
    %20 = vector.broadcast %cst_13 : f32 to vector<8x128xf32>
    %21 = arith.select %19, %12, %20 : vector<8x128xi1>, vector<8x128xf32>
    %cst_14 = arith.constant dense<0.000000e+00> : vector<8xf32>
    %22 = vector.multi_reduction <add>, %21, %cst_14 [1] : vector<8x128xf32> to vector<8xf32>
    %23 = vector.shape_cast %22 : vector<8xf32> to vector<8x1xf32>
    %c0_15 = arith.constant 0 : index
    %c0_16 = arith.constant 0 : index
    %c0_17 = arith.constant 0 : index
    %24 = vector.load %arg5[%c0_15, %c0_16, %c0_17] : memref<1x8x1xf32, #tpu.memory_space<vmem>>, vector<1x8x1xf32>
    %25 = vector.shape_cast %24 : vector<1x8x1xf32> to vector<8x1xf32>
    %26 = vector.shape_cast %23 : vector<8x1xf32> to vector<1x8x1xf32>
    tpu.vector_store %arg5[%c0_15, %c0_16, %c0_17], %26 {strides = array<i32>} : memref<1x8x1xf32, #tpu.memory_space<vmem>>, vector<1x8x1xf32>,
    %27 = arith.mulf %21, %21 : vector<8x128xf32>
    %cst_18 = arith.constant dense<0.000000e+00> : vector<8xf32>
    %28 = vector.multi_reduction <add>, %27, %cst_18 [1] : vector<8x128xf32> to vector<8xf32>
    %29 = vector.shape_cast %28 : vector<8xf32> to vector<8x1xf32>
    %c0_19 = arith.constant 0 : index
    %c0_20 = arith.constant 0 : index
    %c0_21 = arith.constant 0 : index
    %30 = vector.load %arg6[%c0_19, %c0_20, %c0_21] : memref<1x8x1xf32, #tpu.memory_space<vmem>>, vector<1x8x1xf32>
    %31 = vector.shape_cast %30 : vector<1x8x1xf32> to vector<8x1xf32>
    %32 = vector.shape_cast %29 : vector<8x1xf32> to vector<1x8x1xf32>
    tpu.vector_store %arg6[%c0_19, %c0_20, %c0_21], %32 {strides = array<i32>} : memref<1x8x1xf32, #tpu.memory_space<vmem>>, vector<1x8x1xf32>,
    return
  }
  func.func @transform_0(%arg0: i32) -> (i32, i32) {
    %c0_i32 = arith.constant 0 : i32
    %c0_i32_0 = arith.constant 0 : i32
    return %c0_i32, %arg0 : i32, i32
  }
  func.func @transform_1(%arg0: i32) -> (i32, i32) {
    %c0_i32 = arith.constant 0 : i32
    %c0_i32_0 = arith.constant 0 : i32
    %c0_i32_1 = arith.constant 0 : i32
    return %c0_i32, %c0_i32_0 : i32, i32
  }
  func.func @transform_2(%arg0: i32) -> (i32, i32) {
    %c0_i32 = arith.constant 0 : i32
    %c0_i32_0 = arith.constant 0 : i32
    %c0_i32_1 = arith.constant 0 : i32
    return %c0_i32, %c0_i32_0 : i32, i32
  }
  func.func @transform_3(%arg0: i32) -> (i32, i32) {
    %c0_i32 = arith.constant 0 : i32
    %c0_i32_0 = arith.constant 0 : i32
    return %c0_i32, %arg0 : i32, i32
  }
  func.func @transform_4(%arg0: i32) -> (i32, i32, i32) {
    %c0_i32 = arith.constant 0 : i32
    %c0_i32_0 = arith.constant 0 : i32
    %c0_i32_1 = arith.constant 0 : i32
    return %arg0, %c0_i32, %c0_i32_0 : i32, i32, i32
  }
  func.func @transform_5(%arg0: i32) -> (i32, i32, i32) {
    %c0_i32 = arith.constant 0 : i32
    %c0_i32_0 = arith.constant 0 : i32
    %c0_i32_1 = arith.constant 0 : i32
    return %arg0, %c0_i32, %c0_i32_0 : i32, i32, i32
  }
}

</mosaic_0001>

<llo_original>
// kernel: tpu_custom_call.1
$region0: #{tpu_custom_call.1}
  #allocation0 [shape = 'u32[]', space=smem, size = 0x4, offset = 0x4, fixed_abs, tag = 'smem constant byte address 0x4 - core index']
  #allocation1 [shape = 'u32[144,128]{1,0:T(1,128)}', space=vmem, size = 0x12000, scoped, tag = 'internal scratch']
  %s0 = inlined_call_operand.hbm [shape: f32[36,128], index: 0, kind: input, shape index: {}]
  %s1 = inlined_call_operand.vmem [shape: f32[8,36], index: 1, kind: input, shape index: {}]
  %s2 = inlined_call_operand.vmem [shape: f32[8,4], index: 2, kind: input, shape index: {}]
  %s3 = inlined_call_operand.hbm [shape: f32[8,128], index: 3, kind: output, shape index: {0}]
  %s4 = inlined_call_operand.vmem [shape: f32[1,8,1], index: 4, kind: output, shape index: {1}]
  %s5 = inlined_call_operand.vmem [shape: f32[1,8,1], index: 5, kind: output, shape index: {2}]
  %6 = xla_tuple %s3, %s4, %s5
  %s7 = sld [smem:[#allocation0]]
  $region42: #{tpu_custom_call.1} parent=0
    _
  %s9 = ssub.s32 1, %s7
  %s10 = scalar_select 0, %s9, %s7
  $region1: #{tpu_custom_call.1} parent=0
    #allocation2 [shape = 'u8[20480]{0}', space=vmem, size = 0x5000, scoped, tag = 'input window, operand 0, single buffered']
    #allocation3 [shape = 's32[1]{0}', space=sflag, size = 0x4, scoped, tag = 'scoped memory for tpu_custom_call.1']
    #allocation4 [shape = 's32[1]{0}', space=sflag, size = 0x4, scoped, tag = 'scoped memory for tpu_custom_call.1']
    #allocation5 [shape = 'u8[4096]{0}', space=vmem, size = 0x1000, scoped, tag = 'output window, operand 0, single buffered']
    %11 = vsyncpa [#allocation3], 0
    %12 = vsyncpa [#allocation4], 0
    // Predicated region
    $region2: #{tpu_custom_call.1} parent=1 // pred_check
      _
    $region3: #{tpu_custom_call.1} parent=1 // pred_check_branch
      %14 = sbr.rel (0) target = $region5
    $region4: #{tpu_custom_call.1} parent=1 // pred_region
      %s16 = ssub.s32 640, 640
      %17 = vsyncadd [#allocation3], %s16
      %s18 = sshll.u32 [#allocation2], 4
      %s19 = int_to_ptr.vmem [resolvable:$true] %s18
      %24 = dma.hbm_to_vmem [thread:$0]  %s0, 640, %s19, [#allocation3], 128, 128, 8
    $region5: #{tpu_custom_call.1} parent=1 // pred_fallthru
      _
    // Predicated region
    $region6: #{tpu_custom_call.1} parent=1 // pred_check
      _
    $region7: #{tpu_custom_call.1} parent=1 // pred_check_branch
      %26 = sbr.rel (0) target = $region9
    $region8: #{tpu_custom_call.1} parent=1 // pred_region
      _
    $region9: #{tpu_custom_call.1} parent=1 // pred_fallthru
      _
    // Predicated region
    $region10: #{tpu_custom_call.1} parent=1 // pred_check
      _
    $region11: #{tpu_custom_call.1} parent=1 // pred_check_branch
      %28 = sbr.rel (0) target = $region13
    $region12: #{tpu_custom_call.1} parent=1 // pred_region
      _
    $region13: #{tpu_custom_call.1} parent=1 // pred_fallthru
      _
    // Predicated region
    $region14: #{tpu_custom_call.1} parent=1 // pred_check
      _
    $region15: #{tpu_custom_call.1} parent=1 // pred_check_branch
      %30 = sbr.rel (0) target = $region17
    $region16: #{tpu_custom_call.1} parent=1 // pred_region
      %31 = dma.done [#allocation3], 640
    $region17: #{tpu_custom_call.1} parent=1 // pred_fallthru
      _
    %v32 = vld [vmem:[%s1] sm:$0xff]
    %v33 = vld [vmem:[#allocation2] sm:$0xff]
    %v34 = vld [vmem:[#allocation2 + $0x8] sm:$0xff]
    %v35 = vld [vmem:[#allocation2 + $0x10] sm:$0xff]
    %v36 = vld [vmem:[#allocation2 + $0x18] sm:$0xff]
    %v37 = vld [vmem:[#allocation2 + $0x20] sm:$0xf]
    %v38 = vld [vmem:[#allocation2 + $0x10] sm:$0xf]
    %v39 = vld [vmem:[#allocation2 + $0x14] sm:$0xf]
    %v40 = vld [vmem:[#allocation2 + $0x1c] sm:$0xf]
    %v41 = vmax.f32 %v38, %v39
    %v42 = vmax.f32 %v40, %v37
    %v43 = vmax.f32 %v41, %v42
    %v44 = vld [vmem:[%s2] sm:$0xff]
    %vm45 = vcmask 31744
    %v47 = vsel %vm45, %v44, 0
    %vm49 = vcmask 1043456
    %v51 = vsel %vm49, %v43, 0
    %53 = vmatprep.subr.mxu0 0.0
    %54 = vmatpush1.msra.mxu0 0.0
    %55 = vmatprep.subr.mxu0 0.0
    %56 = vmatpush1.msra.mxu0 0.0
    %57 = vmatprep.subr.mxu0 0.0
    %58 = vmatpush1.msra.mxu0 0.0
    %59 = vmatprep.subr.mxu0 0.0
    %60 = vmatpush1.msra.mxu0 0.0
    %61 = vmatprep.subr.mxu0 0.0
    %62 = vmatpush1.msra.mxu0 0.0
    %63 = vmatprep.subr.mxu0 0.0
    %64 = vmatpush1.msra.mxu0 0.0
    %65 = vmatprep.subr.mxu0 0.0
    %66 = vmatpush1.msra.mxu0 0.0
    %67 = vmatprep.subr.mxu0 0.0
    %68 = vmatpush1.msra.mxu0 0.0
    %69 = vmatprep.subr.mxu0 0.0
    %70 = vmatpush1.msra.mxu0 0.0
    %71 = vmatprep.subr.mxu0 0.0
    %72 = vmatpush1.msra.mxu0 0.0
    %73 = vmatprep.subr.mxu0 0.0
    %74 = vmatpush1.msra.mxu0 0.0
    %75 = vmatprep.subr.mxu0 0.0
    %76 = vmatpush1.msra.mxu0 0.0
    %77 = vmatprep.subr.mxu0 0.0
    %78 = vmatpush1.msra.mxu0 0.0
    %79 = vmatprep.subr.mxu0 0.0
    %80 = vmatpush1.msra.mxu0 0.0
    %81 = vmatprep.subr.mxu0 0.0
    %82 = vmatpush1.msra.mxu0 0.0
    %83 = vmatprep.subr.mxu0 0.0
    %84 = vmatpush1.msra.mxu0 %v51
    %85 = vmatprep.subr.mxu0 0.0
    %86 = vmatpush2.msra.mxu0 0.0
    %87 = vmatprep.subr.mxu0 0.0
    %88 = vmatpush2.msra.mxu0 0.0
    %89 = vmatprep.subr.mxu0 0.0
    %90 = vmatpush2.msra.mxu0 0.0
    %91 = vmatprep.subr.mxu0 0.0
    %92 = vmatpush2.msra.mxu0 0.0
    %93 = vmatprep.subr.mxu0 0.0
    %94 = vmatpush2.msra.mxu0 0.0
    %95 = vmatprep.subr.mxu0 0.0
    %96 = vmatpush2.msra.mxu0 0.0
    %97 = vmatprep.subr.mxu0 0.0
    %98 = vmatpush2.msra.mxu0 0.0
    %99 = vmatprep.subr.mxu0 0.0
    %100 = vmatpush2.msra.mxu0 0.0
    %101 = vmatprep.subr.mxu0 0.0
    %102 = vmatpush2.msra.mxu0 0.0
    %103 = vmatprep.subr.mxu0 0.0
    %104 = vmatpush2.msra.mxu0 0.0
    %105 = vmatprep.subr.mxu0 0.0
    %106 = vmatpush2.msra.mxu0 0.0
    %107 = vmatprep.subr.mxu0 0.0
    %108 = vmatpush2.msra.mxu0 0.0
    %109 = vmatprep.subr.mxu0 0.0
    %110 = vmatpush2.msra.mxu0 0.0
    %111 = vmatprep.subr.mxu0 0.0
    %112 = vmatpush2.msra.mxu0 0.0
    %113 = vmatprep.subr.mxu0 0.0
    %114 = vmatpush2.msra.mxu0 0.0
    %115 = vmatprep.subr.mxu0 0.0
    %116 = vmatpush2.msra.mxu0 0.0
    %117 = vmatprep.mubr.f32.mxu0 0.0
    %118 = vmatmul.mubr.f32.gmra.mxu0 %v47
    %v119 = vpop.f32.mrf.mxu0
    %v120 = vadd.f32 0.0, %v119
    %v121 = vpop.f32.mrf.mxu0
    %122 = vdwg.mxu0
    %vm123 = vcmask 293888
    %v125 = vsel %vm123, %v32, 0
    %v128 = vsel %vm49, %v37, 0
    %130 = vmatprep.subr.mxu0 0.0
    %131 = vmatpush1.msra.mxu0 0.0
    %132 = vmatprep.subr.mxu0 0.0
    %133 = vmatpush1.msra.mxu0 0.0
    %134 = vmatprep.subr.mxu0 0.0
    %135 = vmatpush1.msra.mxu0 0.0
    %136 = vmatprep.subr.mxu0 0.0
    %137 = vmatpush1.msra.mxu0 0.0
    %138 = vmatprep.subr.mxu0 0.0
    %139 = vmatpush1.msra.mxu0 0.0
    %140 = vmatprep.subr.mxu0 0.0
    %141 = vmatpush1.msra.mxu0 0.0
    %142 = vmatprep.subr.mxu0 0.0
    %143 = vmatpush1.msra.mxu0 0.0
    %144 = vmatprep.subr.mxu0 0.0
    %145 = vmatpush1.msra.mxu0 0.0
    %146 = vmatprep.subr.mxu0 0.0
    %147 = vmatpush1.msra.mxu0 0.0
    %148 = vmatprep.subr.mxu0 0.0
    %149 = vmatpush1.msra.mxu0 0.0
    %150 = vmatprep.subr.mxu0 0.0
    %151 = vmatpush1.msra.mxu0 0.0
    %152 = vmatprep.subr.mxu0 0.0
    %153 = vmatpush1.msra.mxu0 %v128
    %154 = vmatprep.subr.mxu0 0.0
    %155 = vmatpush1.msra.mxu0 %v36
    %156 = vmatprep.subr.mxu0 0.0
    %157 = vmatpush1.msra.mxu0 %v35
    %158 = vmatprep.subr.mxu0 0.0
    %159 = vmatpush1.msra.mxu0 %v34
    %160 = vmatprep.subr.mxu0 0.0
    %161 = vmatpush1.msra.mxu0 %v33
    %162 = vmatprep.subr.mxu0 0.0
    %163 = vmatpush2.msra.mxu0 0.0
    %164 = vmatprep.subr.mxu0 0.0
    %165 = vmatpush2.msra.mxu0 0.0
    %166 = vmatprep.subr.mxu0 0.0
    %167 = vmatpush2.msra.mxu0 0.0
    %168 = vmatprep.subr.mxu0 0.0
    %169 = vmatpush2.msra.mxu0 0.0
    %170 = vmatprep.subr.mxu0 0.0
    %171 = vmatpush2.msra.mxu0 0.0
    %172 = vmatprep.subr.mxu0 0.0
    %173 = vmatpush2.msra.mxu0 0.0
    %174 = vmatprep.subr.mxu0 0.0
    %175 = vmatpush2.msra.mxu0 0.0
    %176 = vmatprep.subr.mxu0 0.0
    %177 = vmatpush2.msra.mxu0 0.0
    %178 = vmatprep.subr.mxu0 0.0
    %179 = vmatpush2.msra.mxu0 0.0
    %180 = vmatprep.subr.mxu0 0.0
    %181 = vmatpush2.msra.mxu0 0.0
    %182 = vmatprep.subr.mxu0 0.0
    %183 = vmatpush2.msra.mxu0 0.0
    %184 = vmatprep.subr.mxu0 0.0
    %185 = vmatpush2.msra.mxu0 0.0
    %186 = vmatprep.subr.mxu0 0.0
    %187 = vmatpush2.msra.mxu0 0.0
    %188 = vmatprep.subr.mxu0 0.0
    %189 = vmatpush2.msra.mxu0 0.0
    %190 = vmatprep.subr.mxu0 0.0
    %191 = vmatpush2.msra.mxu0 0.0
    %192 = vmatprep.subr.mxu0 0.0
    %193 = vmatpush2.msra.mxu0 0.0
    %194 = vmatprep.mubr.f32.mxu0 0.0
    %195 = vmatmul.mubr.f32.gmra.mxu0 %v125
    %v196 = vpop.f32.mrf.mxu0
    %v197 = vadd.f32 %v120, %v196
    %v198 = vpop.f32.mrf.mxu0
    %199 = vdwg.mxu0
    %200 = vst [vmem:[#allocation5] sm:$0xff] %v197
    %v201 = vlaneseq
    %v202 = vand.u32 %v201, 127
    %s203 = smul.u32 0, 128
    %v204 = vstv %s203
    %v205 = vadd.s32 %v202, %v204
    %vm206 = vcmp.lt.s32.totalorder %v205, 128
    %v207 = vsel %vm206, %v197, 0.0
    %208 = vadd.xlane.f32.xlu0 %v207
    %v209 = vpop.xlane.xlu0 %208
    %vm210 = vcmask 7168
    %211 = vst.msk [vmem:[%s4] sm:$0xff] %vm210, %v209
    %v212 = vmul.f32 %v207, %v207
    %213 = vadd.xlane.f32.xlu0 %v212
    %v214 = vpop.xlane.xlu0 %213
    %215 = vst.msk [vmem:[%s5] sm:$0xff] %vm210, %v214
    // Predicated region
    $region18: #{tpu_custom_call.1} parent=1 // pred_check
      _
    $region19: #{tpu_custom_call.1} parent=1 // pred_check_branch
      %217 = sbr.rel (0) target = $region21
    $region20: #{tpu_custom_call.1} parent=1 // pred_region
      %s219 = ssub.s32 128, 128
      %220 = vsyncadd [#allocation4], %s219
      %s222 = sshll.u32 [#allocation5], 4
      %s223 = int_to_ptr.vmem [resolvable:$true] %s222
      %225 = dma.vmem_to_hbm [thread:$0]  %s223, 128, %s3, [#allocation4]
    $region21: #{tpu_custom_call.1} parent=1 // pred_fallthru
      _
    // Predicated region
    $region22: #{tpu_custom_call.1} parent=1 // pred_check
      _
    $region23: #{tpu_custom_call.1} parent=1 // pred_check_branch
      %227 = sbr.rel (0) target = $region25
    $region24: #{tpu_custom_call.1} parent=1 // pred_region
      _
    $region25: #{tpu_custom_call.1} parent=1 // pred_fallthru
      _
    // Predicated region
    $region26: #{tpu_custom_call.1} parent=1 // pred_check
      _
    $region27: #{tpu_custom_call.1} parent=1 // pred_check_branch
      %229 = sbr.rel (0) target = $region29
    $region28: #{tpu_custom_call.1} parent=1 // pred_region
      _
    $region29: #{tpu_custom_call.1} parent=1 // pred_fallthru
      _
    // Predicated region
    $region30: #{tpu_custom_call.1} parent=1 // pred_check
      _
    $region31: #{tpu_custom_call.1} parent=1 // pred_check_branch
      %231 = sbr.rel (0) target = $region33
    $region32: #{tpu_custom_call.1} parent=1 // pred_region
      %232 = dma.done [#allocation4], 128
    $region33: #{tpu_custom_call.1} parent=1 // pred_fallthru
      _
    // Predicated region
    $region34: #{tpu_custom_call.1} parent=1 // pred_check
      _
    $region35: #{tpu_custom_call.1} parent=1 // pred_check_branch
      %234 = sbr.rel (0) target = $region37
    $region36: #{tpu_custom_call.1} parent=1 // pred_region
      _
    $region37: #{tpu_custom_call.1} parent=1 // pred_fallthru
      _
    // Predicated region
    $region38: #{tpu_custom_call.1} parent=1 // pred_check
      _
    $region39: #{tpu_custom_call.1} parent=1 // pred_check_branch
      %236 = sbr.rel (0) target = $region41
    $region40: #{tpu_custom_call.1} parent=1 // pred_region
      _
    $region41: #{tpu_custom_call.1} parent=1 // pred_fallthru
      _
    %237 = vsyncpa [#allocation3], 1
    %238 = vsyncpa [#allocation4], 1

</llo_original>
